<compile_context>
chip_gen: v5e
topology: v5e:2x2
jax: 0.10.0
libtpu: 0.0.40
codegen_flags: <defaults>
</compile_context>

<pallas_src>
import collections
import functools

import jax
import jax.numpy as jnp
from jax import lax
from jax.experimental import pallas as pl
from jax.experimental.pallas import tpu as pltpu


def _round_up(a, m):
    return (a + m - 1) // m * m


def _nbytes(a):
    return int(a.size) * int(jnp.dtype(a.dtype).itemsize)


def _pad_to(a, shape):
    return jnp.pad(a, [(0, t - s) for s, t in zip(a.shape, shape)])


def _tpu_generation_and_cores():
    """Best-effort (generation, tensorcores-per-chip) from the device kind string."""
    try:
        kind = jax.devices()[0].device_kind.lower()
    except Exception:
        return 6, 1
    if "7" in kind:
        return 7, 2
    if "v6" in kind:
        return 6, 1
    if "v5" in kind:
        return 5, 1
    return 6, 1


# ----------------------------------------------------------------------------- kernel
def _expert_kernel(depth, hidden_unroll, *refs):
    if depth > 0:
        (x_ref, w_in_ref, b_in_ref, w_h_ref, b_h_ref,
         w_out_ref, b_out_ref, o_ref) = refs
    else:
        (x_ref, w_in_ref, b_in_ref, w_out_ref, b_out_ref, o_ref) = refs
        w_h_ref = b_h_ref = None

    cdt = w_in_ref.dtype  # MXU compute dtype (bf16 by default)

    # Input layer:  z^T = W_in^T @ x^T   -> (Wp, bt), f32 accumulation + f32 bias.
    z = jnp.dot(w_in_ref[...], x_ref[...], preferred_element_type=jnp.float32)
    z = z + b_in_ref[...]                                   # (Wp,1) lane-broadcast

    # Hidden layers: z^T = relu(W_h^T @ z^T + b_h^T)
    if depth > 0:
        def layer(i, z):
            h = jnp.dot(w_h_ref[i], z.astype(cdt),
                        preferred_element_type=jnp.float32)
            return jnp.maximum(h + b_h_ref[i], 0.0)

        if depth <= 4:                       # small depth: static unroll
            for i in range(depth):
                z = layer(i, z)
        else:                                # large depth: bound vreg live ranges
            z = lax.fori_loop(0, depth, layer, z,
                              unroll=min(hidden_unroll, depth))

    # Output layer (VPU mul + XLU sublane reduce): y = sum_k w_out[k] * z^T[k, :].
    y = jnp.sum(z * w_out_ref[...], axis=0, keepdims=True)  # (1, bt), f32
    y = y + b_out_ref[...]                                   # folded b_out+final_bias
    o_ref[...] = y.reshape(o_ref.shape).astype(o_ref.dtype)


# ----------------------------------------------------------------- one-time host prep
ExpertMeta = collections.namedtuple(
    "ExpertMeta", ["n_inputs", "depth", "width", "Wp", "compute_dtype"])


def prepare_params(params, *, compute_dtype=jnp.bfloat16, lane_multiple=None):
    """Pad / transpose / cast / stack the weights ONCE. Returns (prep_dict, meta)."""
    cdt = jnp.dtype(compute_dtype)
    n_inputs, width = params["w_in"].shape
    depth = len(params["w_h"])

    if lane_multiple is None:
        gen, _ = _tpu_generation_and_cores()
        # 256x256 MXU on v6e/v7x: round genuinely-wide experts to 256 lanes.
        lane_multiple = 256 if (gen >= 6 and width >= 128) else 128
    Wp = _round_up(width, lane_multiple)

    prep = {
        "w_in_t": _pad_to(params["w_in"].T, (Wp, n_inputs)).astype(cdt),     # (Wp,n_in)
        "b_in":   _pad_to(params["b_in"].T, (Wp, 1)).astype(jnp.float32),    # (Wp,1)
        "w_out":  _pad_to(params["w_out"], (Wp, 1)).astype(jnp.float32),     # (Wp,1)
        "b_out":  (params["b_out"] + params["final_bias"]                    # (1,1)
                   ).reshape(1, 1).astype(jnp.float32),
    }
    if depth > 0:
        prep["w_h_t"] = jnp.stack(
            [_pad_to(w.T, (Wp, Wp)) for w in params["w_h"]]).astype(cdt)     # (d,Wp,Wp)
        prep["b_h"] = jnp.stack(
            [_pad_to(b.T, (Wp, 1)) for b in params["b_h"]]).astype(jnp.float32)

    prep = {k: jax.block_until_ready(v) for k, v in prep.items()}
    return prep, ExpertMeta(n_inputs, depth, width, Wp, cdt)


# --------------------------------------------------------------------------- forward
def expert_model_forward(x, prep, meta, *, batch_tile=None, hidden_unroll=2):
    """x: (B, n_inputs) f32 -> (B, 1) f32."""
    B, n_in = x.shape
    assert n_in == meta.n_inputs
    depth, Wp, cdt = meta.depth, meta.Wp, meta.compute_dtype
    gen, cores = _tpu_generation_and_cores()

    # ---- batch tiling: always a multiple of 128 (lane-dense output / full MXU N) ---
    B128 = _round_up(B, 128)
    if batch_tile is None:
        if cores >= 2 and B128 >= 256:
            # v7x: even >=2-step grid so ("parallel",) shards across both TCs.
            nt = max(2, pl.cdiv(B128, 512))
            nt += nt % 2
            batch_tile = _round_up(pl.cdiv(B128, nt), 128)
        else:
            # single TC: one big tile (grid is a serial loop; steps are pure overhead)
            batch_tile = min(B128, 512)
    batch_tile = max(128, _round_up(int(batch_tile), 128))
    num_tiles = pl.cdiv(B128, batch_tile)
    if cores >= 2 and num_tiles > 1 and (num_tiles % 2):
        num_tiles += 1                      # keep the v7x grid even
    B_pad = num_tiles * batch_tile

    # Per-call input prep (only thing that legitimately changes per call).
    x_t = jnp.pad(x.T, ((0, 0), (0, B_pad - B))).astype(cdt)       # (n_in, B_pad)

    # ---- specs ----
    def full_spec(a):
        nd = a.ndim
        return pl.BlockSpec(a.shape, lambda i, _nd=nd: (0,) * _nd)

    operands = [x_t, prep["w_in_t"], prep["b_in"]]
    in_specs = [pl.BlockSpec((n_in, batch_tile), lambda i: (0, i)),   # streamed x tile
                full_spec(prep["w_in_t"]), full_spec(prep["b_in"])]
    if depth > 0:
        operands += [prep["w_h_t"], prep["b_h"]]
        in_specs += [full_spec(prep["w_h_t"]), full_spec(prep["b_h"])]
    operands += [prep["w_out"], prep["b_out"]]
    in_specs += [full_spec(prep["w_out"]), full_spec(prep["b_out"])]

    out_specs = pl.BlockSpec((1, 1, batch_tile), lambda i: (i, 0, 0))
    out_shape = jax.ShapeDtypeStruct((num_tiles, 1, batch_tile), jnp.float32)

    # ---- VMEM budget (all inputs are double-buffered by default pipelining) ----
    weight_bytes = sum(_nbytes(a) for a in operands[1:])
    resident = (2 * n_in * batch_tile * cdt.itemsize      # x double buffer
                + 2 * batch_tile * 4                      # out double buffer
                + 2 * weight_bytes)                       # resident weights (2x)
    scratch = 6 * Wp * batch_tile * 4                     # activation temporaries
    vmem_cap = (48 << 20) if gen >= 7 else (100 << 20)    # headroom on v7x's 64 MiB
    vmem_limit = int(min(max(resident + scratch + (8 << 20), 16 << 20), vmem_cap))

    # ---- cost estimate so XLA schedules this tiny custom call sensibly ----
    flops = 2 * B_pad * (n_in * Wp + depth * Wp * Wp + Wp)
    cost = pl.CostEstimate(flops=flops, transcendentals=0,
                           bytes_accessed=_nbytes(x_t) + weight_bytes + B_pad * 4)

    kernel = functools.partial(_expert_kernel, depth, hidden_unroll)

    y_tiles = pl.pallas_call(
        kernel,
        out_shape=out_shape,
        grid_spec=pl.GridSpec(grid=(num_tiles,), in_specs=in_specs,
                              out_specs=out_specs),
        compiler_params=pltpu.CompilerParams(
            dimension_semantics=("parallel",),
            vmem_limit_bytes=vmem_limit),
        cost_estimate=cost,
    )(*operands)

    # (num_tiles, 1, bt) -> (B_pad, 1); row-major flatten preserves row order.
    return y_tiles.reshape(B_pad, 1)[:B]


# --------------------------------------------------------------------- init + reference
def init_params(key, n_inputs, depth, width, final_bias_init=0.0):
    """Deterministic init mimicking torch.nn.Linear's U(-1/sqrt(fan_in), +...)."""
    def linear(key, fan_in, fan_out):
        kw, kb = jax.random.split(key)
        bound = 1.0 / jnp.sqrt(jnp.float32(fan_in))
        w = jax.random.uniform(kw, (fan_in, fan_out), jnp.float32, -bound, bound)
        b = jax.random.uniform(kb, (1, fan_out), jnp.float32, -bound, bound)
        return w, b

    keys = jax.random.split(key, depth + 2)
    w_in, b_in = linear(keys[0], n_inputs, width)
    w_h, b_h = [], []
    for l in range(depth):
        w, b = linear(keys[1 + l], width, width)
        w_h.append(w)
        b_h.append(b)
    w_out, b_out = linear(keys[depth + 1], width, 1)
    final_bias = jnp.full((1, 1), final_bias_init, dtype=jnp.float32)
    return {"w_in": w_in, "b_in": b_in, "w_h": w_h, "b_h": b_h,
            "w_out": w_out, "b_out": b_out, "final_bias": final_bias}


def expert_model_ref(x, params, compute_dtype=jnp.float32):
    """Pure-JAX reference (mirrors the kernel's mixed-precision recipe when
    compute_dtype=bf16: bf16 matmul inputs, f32 accumulation, f32 output layer)."""
    cdt = compute_dtype
    z = jnp.dot(x.astype(cdt), params["w_in"].astype(cdt),
                preferred_element_type=jnp.float32) + params["b_in"]
    for w, b in zip(params["w_h"], params["b_h"]):
        z = jnp.maximum(jnp.dot(z.astype(cdt), w.astype(cdt),
                                preferred_element_type=jnp.float32) + b, 0.0)
    y = jnp.dot(z, params["w_out"], preferred_element_type=jnp.float32)
    return y + params["b_out"] + params["final_bias"]


# ------------------------------------------------------------------------------- main
if __name__ == "__main__":
    n_inputs, depth, width = 32, 2, 32
    batch = 256

    key = jax.random.PRNGKey(0)
    kp, kx = jax.random.split(key)
    params = init_params(kp, n_inputs, depth, width, final_bias_init=0.5)
    x = jax.random.normal(kx, (batch, n_inputs), dtype=jnp.float32)

    # One-time weight prep (pad / transpose / cast / stack / fold biases).
    prep, meta = prepare_params(params)

    y = expert_model_forward(x, prep, meta)
    y = jax.block_until_ready(y)
    assert y.shape == (batch, 1)
    assert y.dtype == jnp.float32

    # Precision-matched check (bf16 MXU inputs, f32 accumulation) — tight.
    y_ref_mixed = expert_model_ref(x, params, compute_dtype=jnp.bfloat16)
    assert jnp.allclose(y, y_ref_mixed, atol=2e-3, rtol=2e-3), \
        float(jnp.max(jnp.abs(y - y_ref_mixed)))

    # Sanity check vs full-f32 reference — loose (bf16 rounding only).
    y_ref_f32 = expert_model_ref(x, params, compute_dtype=jnp.float32)
    assert jnp.allclose(y, y_ref_f32, atol=1e-1, rtol=1e-1)

    print("KERNEL_OK")
</pallas_src>

<mosaic_0001>
module attributes {stable_mosaic.version = 11 : i64} {
  func.func @_expert_kernel(%arg0: i32, %arg1: memref<32x256xbf16, #tpu.memory_space<vmem>>, %arg2: memref<128x32xbf16, #tpu.memory_space<vmem>>, %arg3: memref<128x1xf32, #tpu.memory_space<vmem>>, %arg4: memref<2x128x128xbf16, #tpu.memory_space<vmem>>, %arg5: memref<2x128x1xf32, #tpu.memory_space<vmem>>, %arg6: memref<128x1xf32, #tpu.memory_space<vmem>>, %arg7: memref<1x1xf32, #tpu.memory_space<vmem>>, %arg8: memref<1x1x256xf32, #tpu.memory_space<vmem>>) attributes {dimension_semantics = [#tpu.dimension_semantics<parallel>], iteration_bounds = array<i64: 1>, scalar_prefetch = 0 : i64, scratch_operands = 0 : i64, tpu.core_type = #tpu.core_type<tc>, window_params = [{transform_indices = @transform_0, window_bounds = array<i64: 32, 256>}, {pipeline_mode = #tpu.pipeline_mode<synchronous>, transform_indices = @transform_1, window_bounds = array<i64: 128, 32>}, {pipeline_mode = #tpu.pipeline_mode<synchronous>, transform_indices = @transform_2, window_bounds = array<i64: 128, 1>}, {pipeline_mode = #tpu.pipeline_mode<synchronous>, transform_indices = @transform_3, window_bounds = array<i64: 2, 128, 128>}, {pipeline_mode = #tpu.pipeline_mode<synchronous>, transform_indices = @transform_4, window_bounds = array<i64: 2, 128, 1>}, {pipeline_mode = #tpu.pipeline_mode<synchronous>, transform_indices = @transform_5, window_bounds = array<i64: 128, 1>}, {pipeline_mode = #tpu.pipeline_mode<synchronous>, transform_indices = @transform_6, window_bounds = array<i64: 1, 1>}, {transform_indices = @transform_7, window_bounds = array<i64: 1, 1, 256>}]} {
    %c0 = arith.constant 0 : index
    %c0_0 = arith.constant 0 : index
    %0 = vector.load %arg2[%c0, %c0_0] : memref<128x32xbf16, #tpu.memory_space<vmem>>, vector<128x32xbf16>
    %c0_1 = arith.constant 0 : index
    %c0_2 = arith.constant 0 : index
    %1 = vector.load %arg1[%c0_1, %c0_2] : memref<32x256xbf16, #tpu.memory_space<vmem>>, vector<32x256xbf16>
    %cst = arith.constant dense<0.000000e+00> : vector<128x256xf32>
    %2 = tpu.matmul %0, %1, %cst {dimension_numbers = #tpu.dot_dimension_numbers<[1], [0], [0], [1], [0, 0, 1, 1], [], []>} : vector<128x32xbf16>, vector<32x256xbf16>, vector<128x256xf32> -> vector<128x256xf32>
    %c0_3 = arith.constant 0 : index
    %c0_4 = arith.constant 0 : index
    %3 = vector.load %arg3[%c0_3, %c0_4] : memref<128x1xf32, #tpu.memory_space<vmem>>, vector<128x1xf32>
    %4 = vector.broadcast %3 : vector<128x1xf32> to vector<128x256xf32>
    %5 = arith.addf %2, %4 : vector<128x256xf32>
    %c0_5 = arith.constant 0 : index
    %c0_6 = arith.constant 0 : index
    %c0_7 = arith.constant 0 : index
    %6 = vector.load %arg4[%c0_5, %c0_6, %c0_7] : memref<2x128x128xbf16, #tpu.memory_space<vmem>>, vector<1x128x128xbf16>
    %7 = vector.shape_cast %6 : vector<1x128x128xbf16> to vector<128x128xbf16>
    %8 = arith.truncf %5 : vector<128x256xf32> to vector<128x256xbf16>
    %cst_8 = arith.constant dense<0.000000e+00> : vector<128x256xf32>
    %9 = tpu.matmul %7, %8, %cst_8 {dimension_numbers = #tpu.dot_dimension_numbers<[1], [0], [0], [1], [0, 0, 1, 1], [], []>} : vector<128x128xbf16>, vector<128x256xbf16>, vector<128x256xf32> -> vector<128x256xf32>
    %c0_9 = arith.constant 0 : index
    %c0_10 = arith.constant 0 : index
    %c0_11 = arith.constant 0 : index
    %10 = vector.load %arg5[%c0_9, %c0_10, %c0_11] : memref<2x128x1xf32, #tpu.memory_space<vmem>>, vector<1x128x1xf32>
    %11 = vector.shape_cast %10 : vector<1x128x1xf32> to vector<128x1xf32>
    %12 = vector.broadcast %11 : vector<128x1xf32> to vector<128x256xf32>
    %13 = arith.addf %9, %12 : vector<128x256xf32>
    %cst_12 = arith.constant 0.000000e+00 : f32
    %14 = vector.broadcast %cst_12 : f32 to vector<128x256xf32>
    %15 = arith.maximumf %13, %14 : vector<128x256xf32>
    %c1 = arith.constant 1 : index
    %c0_13 = arith.constant 0 : index
    %c0_14 = arith.constant 0 : index
    %16 = vector.load %arg4[%c1, %c0_13, %c0_14] : memref<2x128x128xbf16, #tpu.memory_space<vmem>>, vector<1x128x128xbf16>
    %17 = vector.shape_cast %16 : vector<1x128x128xbf16> to vector<128x128xbf16>
    %18 = arith.truncf %15 : vector<128x256xf32> to vector<128x256xbf16>
    %cst_15 = arith.constant dense<0.000000e+00> : vector<128x256xf32>
    %19 = tpu.matmul %17, %18, %cst_15 {dimension_numbers = #tpu.dot_dimension_numbers<[1], [0], [0], [1], [0, 0, 1, 1], [], []>} : vector<128x128xbf16>, vector<128x256xbf16>, vector<128x256xf32> -> vector<128x256xf32>
    %c1_16 = arith.constant 1 : index
    %c0_17 = arith.constant 0 : index
    %c0_18 = arith.constant 0 : index
    %20 = vector.load %arg5[%c1_16, %c0_17, %c0_18] : memref<2x128x1xf32, #tpu.memory_space<vmem>>, vector<1x128x1xf32>
    %21 = vector.shape_cast %20 : vector<1x128x1xf32> to vector<128x1xf32>
    %22 = vector.broadcast %21 : vector<128x1xf32> to vector<128x256xf32>
    %23 = arith.addf %19, %22 : vector<128x256xf32>
    %cst_19 = arith.constant 0.000000e+00 : f32
    %24 = vector.broadcast %cst_19 : f32 to vector<128x256xf32>
    %25 = arith.maximumf %23, %24 : vector<128x256xf32>
    %c0_20 = arith.constant 0 : index
    %c0_21 = arith.constant 0 : index
    %26 = vector.load %arg6[%c0_20, %c0_21] : memref<128x1xf32, #tpu.memory_space<vmem>>, vector<128x1xf32>
    %27 = vector.broadcast %26 : vector<128x1xf32> to vector<128x256xf32>
    %28 = arith.mulf %25, %27 : vector<128x256xf32>
    %cst_22 = arith.constant dense<0.000000e+00> : vector<256xf32>
    %29 = vector.multi_reduction <add>, %28, %cst_22 [0] : vector<128x256xf32> to vector<256xf32>
    %30 = vector.shape_cast %29 : vector<256xf32> to vector<1x256xf32>
    %c0_23 = arith.constant 0 : index
    %c0_24 = arith.constant 0 : index
    %31 = vector.load %arg7[%c0_23, %c0_24] : memref<1x1xf32, #tpu.memory_space<vmem>>, vector<1x1xf32>
    %32 = vector.broadcast %31 : vector<1x1xf32> to vector<1x256xf32>
    %33 = arith.addf %30, %32 : vector<1x256xf32>
    %34 = vector.shape_cast %33 : vector<1x256xf32> to vector<1x1x256xf32>
    %c0_25 = arith.constant 0 : index
    %c0_26 = arith.constant 0 : index
    %c0_27 = arith.constant 0 : index
    %35 = vector.load %arg8[%c0_25, %c0_26, %c0_27] : memref<1x1x256xf32, #tpu.memory_space<vmem>>, vector<1x1x256xf32>
    tpu.vector_store %arg8[%c0_25, %c0_26, %c0_27], %34 {strides = array<i32>} : memref<1x1x256xf32, #tpu.memory_space<vmem>>, vector<1x1x256xf32>,
    return
  }
  func.func @transform_0(%arg0: i32) -> (i32, i32) {
    %c0_i32 = arith.constant 0 : i32
    %c0_i32_0 = arith.constant 0 : i32
    return %c0_i32, %arg0 : i32, i32
  }
  func.func @transform_1(%arg0: i32) -> (i32, i32) {
    %c0_i32 = arith.constant 0 : i32
    %c0_i32_0 = arith.constant 0 : i32
    %c0_i32_1 = arith.constant 0 : i32
    return %c0_i32, %c0_i32_0 : i32, i32
  }
  func.func @transform_2(%arg0: i32) -> (i32, i32) {
    %c0_i32 = arith.constant 0 : i32
    %c0_i32_0 = arith.constant 0 : i32
    %c0_i32_1 = arith.constant 0 : i32
    return %c0_i32, %c0_i32_0 : i32, i32
  }
  func.func @transform_3(%arg0: i32) -> (i32, i32, i32) {
    %c0_i32 = arith.constant 0 : i32
    %c0_i32_0 = arith.constant 0 : i32
    %c0_i32_1 = arith.constant 0 : i32
    %c0_i32_2 = arith.constant 0 : i32
    return %c0_i32, %c0_i32_0, %c0_i32_1 : i32, i32, i32
  }
  func.func @transform_4(%arg0: i32) -> (i32, i32, i32) {
    %c0_i32 = arith.constant 0 : i32
    %c0_i32_0 = arith.constant 0 : i32
    %c0_i32_1 = arith.constant 0 : i32
    %c0_i32_2 = arith.constant 0 : i32
    return %c0_i32, %c0_i32_0, %c0_i32_1 : i32, i32, i32
  }
  func.func @transform_5(%arg0: i32) -> (i32, i32) {
    %c0_i32 = arith.constant 0 : i32
    %c0_i32_0 = arith.constant 0 : i32
    %c0_i32_1 = arith.constant 0 : i32
    return %c0_i32, %c0_i32_0 : i32, i32
  }
  func.func @transform_6(%arg0: i32) -> (i32, i32) {
    %c0_i32 = arith.constant 0 : i32
    %c0_i32_0 = arith.constant 0 : i32
    %c0_i32_1 = arith.constant 0 : i32
    return %c0_i32, %c0_i32_0 : i32, i32
  }
  func.func @transform_7(%arg0: i32) -> (i32, i32, i32) {
    %c0_i32 = arith.constant 0 : i32
    %c0_i32_0 = arith.constant 0 : i32
    %c0_i32_1 = arith.constant 0 : i32
    return %arg0, %c0_i32, %c0_i32_0 : i32, i32, i32
  }
}

</mosaic_0001>

<llo_original>
// kernel: tpu_custom_call.1
$region0: #{tpu_custom_call.1}
  #allocation0 [shape = 'u32[]', space=smem, size = 0x4, offset = 0x4, fixed_abs, tag = 'smem constant byte address 0x4 - core index']
  #allocation1 [shape = 'u32[72,128]{1,0:T(1,128)}', space=vmem, size = 0x9000, scoped, tag = 'internal scratch']
  #allocation2 [shape = 'f32[1,1]{1,0:T(1,128)S(1)}', space=vmem, size = 0x200, scoped, tag = 'scoped memory for tpu_custom_call.1']
  %s0 = inlined_call_operand.vmem [shape: bf16[32,256], index: 0, kind: input, shape index: {}]
  %s1 = inlined_call_operand.vmem [shape: bf16[128,32], index: 1, kind: input, shape index: {}]
  %s2 = inlined_call_operand.vmem [shape: f32[128,1], index: 2, kind: input, shape index: {}]
  %s3 = inlined_call_operand.vmem [shape: bf16[2,128,128], index: 3, kind: input, shape index: {}]
  %s4 = inlined_call_operand.vmem [shape: f32[2,128,1], index: 4, kind: input, shape index: {}]
  %s5 = inlined_call_operand.vmem [shape: f32[128,1], index: 5, kind: input, shape index: {}]
  %s6 = inlined_call_operand.<no memory space> [shape: f32[1,1], index: 6, kind: input, shape index: {}]
  %s7 = inlined_call_operand.hbm [shape: f32[1,1,256], index: 7, kind: output, shape index: {}]
  %s8 = sld [smem:[#allocation0]]
  $region38: #{tpu_custom_call.1} parent=0
    _
  %s10 = ssub.s32 1, %s8
  %s11 = scalar_select 0, %s10, %s8
  %v12 = vstv %s6
  %13 = vst [vmem:[#allocation2] sm:$0x1] %v12
  $region1: #{tpu_custom_call.1} parent=0
    #allocation3 [shape = 'u8[1024]{0}', space=vmem, size = 0x400, scoped, tag = 'output window, operand 0, single buffered']
    #allocation4 [shape = 's32[1]{0}', space=sflag, size = 0x4, scoped, tag = 'scoped memory for tpu_custom_call.1']
    %14 = vsyncpa [#allocation4], 0
    // Predicated region
    $region2: #{tpu_custom_call.1} parent=1 // pred_check
      _
    $region3: #{tpu_custom_call.1} parent=1 // pred_check_branch
      %16 = sbr.rel (0) target = $region5
    $region4: #{tpu_custom_call.1} parent=1 // pred_region
      _
    $region5: #{tpu_custom_call.1} parent=1 // pred_fallthru
      _
    // Predicated region
    $region6: #{tpu_custom_call.1} parent=1 // pred_check
      _
    $region7: #{tpu_custom_call.1} parent=1 // pred_check_branch
      %18 = sbr.rel (0) target = $region9
    $region8: #{tpu_custom_call.1} parent=1 // pred_region
      _
    $region9: #{tpu_custom_call.1} parent=1 // pred_fallthru
      _
    // Predicated region
    $region10: #{tpu_custom_call.1} parent=1 // pred_check
      _
    $region11: #{tpu_custom_call.1} parent=1 // pred_check_branch
      %20 = sbr.rel (0) target = $region13
    $region12: #{tpu_custom_call.1} parent=1 // pred_region
      _
    $region13: #{tpu_custom_call.1} parent=1 // pred_fallthru
      _
    // Predicated region
    $region14: #{tpu_custom_call.1} parent=1 // pred_check
      _
    $region15: #{tpu_custom_call.1} parent=1 // pred_check_branch
      %22 = sbr.rel (0) target = $region17
    $region16: #{tpu_custom_call.1} parent=1 // pred_region
      _
    $region17: #{tpu_custom_call.1} parent=1 // pred_fallthru
      _
    // Predicated region
    $region18: #{tpu_custom_call.1} parent=1 // pred_check
      _
    $region19: #{tpu_custom_call.1} parent=1 // pred_check_branch
      %24 = sbr.rel (0) target = $region21
    $region20: #{tpu_custom_call.1} parent=1 // pred_region
      _
    $region21: #{tpu_custom_call.1} parent=1 // pred_fallthru
      _
    // Predicated region
    $region22: #{tpu_custom_call.1} parent=1 // pred_check
      _
    $region23: #{tpu_custom_call.1} parent=1 // pred_check_branch
      %26 = sbr.rel (0) target = $region25
    $region24: #{tpu_custom_call.1} parent=1 // pred_region
      _
    $region25: #{tpu_custom_call.1} parent=1 // pred_fallthru
      _
    // Predicated region
    $region26: #{tpu_custom_call.1} parent=1 // pred_check
      _
    $region27: #{tpu_custom_call.1} parent=1 // pred_check_branch
      %28 = sbr.rel (0) target = $region29
    $region28: #{tpu_custom_call.1} parent=1 // pred_region
      _
    $region29: #{tpu_custom_call.1} parent=1 // pred_fallthru
      _
    %v30 = vld [vmem:[%s1] sm:$0xf]
    %v31 = vld [vmem:[%s1 + $0x4] sm:$0xf]
    %v32 = vld [vmem:[%s1 + $0x8] sm:$0xf]
    %v33 = vld [vmem:[%s1 + $0xc] sm:$0xf]
    %v34 = vld [vmem:[%s1 + $0x10] sm:$0xf]
    %v35 = vld [vmem:[%s1 + $0x14] sm:$0xf]
    %v36 = vld [vmem:[%s1 + $0x18] sm:$0xf]
    %v37 = vld [vmem:[%s1 + $0x1c] sm:$0xf]
    %v38 = vld [vmem:[%s1 + $0x20] sm:$0xf]
    %v39 = vld [vmem:[%s1 + $0x24] sm:$0xf]
    %v40 = vld [vmem:[%s1 + $0x28] sm:$0xf]
    %v41 = vld [vmem:[%s1 + $0x2c] sm:$0xf]
    %v42 = vld [vmem:[%s1 + $0x30] sm:$0xf]
    %v43 = vld [vmem:[%s1 + $0x34] sm:$0xf]
    %v44 = vld [vmem:[%s1 + $0x38] sm:$0xf]
    %v45 = vld [vmem:[%s1 + $0x3c] sm:$0xf]
    %v46 = vld [vmem:[%s0] sm:$0xff]
    %v47 = vld [vmem:[%s0 + $0x8] sm:$0xff]
    %v48 = vld [vmem:[%s0 + $0x10] sm:$0xff]
    %v49 = vld [vmem:[%s0 + $0x18] sm:$0xff]
    %v50 = vld [vmem:[%s2] sm:$0xff]
    %v51 = vld [vmem:[%s2 + $0x8] sm:$0xff]
    %v52 = vld [vmem:[%s2 + $0x10] sm:$0xff]
    %v53 = vld [vmem:[%s2 + $0x18] sm:$0xff]
    %v54 = vld [vmem:[%s2 + $0x20] sm:$0xff]
    %v55 = vld [vmem:[%s2 + $0x28] sm:$0xff]
    %v56 = vld [vmem:[%s2 + $0x30] sm:$0xff]
    %v57 = vld [vmem:[%s2 + $0x38] sm:$0xff]
    %v58 = vld [vmem:[%s2 + $0x40] sm:$0xff]
    %v59 = vld [vmem:[%s2 + $0x48] sm:$0xff]
    %v60 = vld [vmem:[%s2 + $0x50] sm:$0xff]
    %v61 = vld [vmem:[%s2 + $0x58] sm:$0xff]
    %v62 = vld [vmem:[%s2 + $0x60] sm:$0xff]
    %v63 = vld [vmem:[%s2 + $0x68] sm:$0xff]
    %v64 = vld [vmem:[%s2 + $0x70] sm:$0xff]
    %v65 = vld [vmem:[%s2 + $0x78] sm:$0xff]
    %67 = vset.pattern.permute.xlu0 0
    %68 = vperm.xlu0 %67, %v50
    %v69 = vpop.permute.xlu0 %68
    %72 = vset.pattern.permute.xlu0 0
    %73 = vperm.xlu0 %72, %v51
    %v74 = vpop.permute.xlu0 %73
    %77 = vset.pattern.permute.xlu0 0
    %78 = vperm.xlu0 %77, %v52
    %v79 = vpop.permute.xlu0 %78
    %82 = vset.pattern.permute.xlu0 0
    %83 = vperm.xlu0 %82, %v53
    %v84 = vpop.permute.xlu0 %83
    %87 = vset.pattern.permute.xlu0 0
    %88 = vperm.xlu0 %87, %v54
    %v89 = vpop.permute.xlu0 %88
    %92 = vset.pattern.permute.xlu0 0
    %93 = vperm.xlu0 %92, %v55
    %v94 = vpop.permute.xlu0 %93
    %97 = vset.pattern.permute.xlu0 0
    %98 = vperm.xlu0 %97, %v56
    %v99 = vpop.permute.xlu0 %98
    %102 = vset.pattern.permute.xlu0 0
    %103 = vperm.xlu0 %102, %v57
    %v104 = vpop.permute.xlu0 %103
    %107 = vset.pattern.permute.xlu0 0
    %108 = vperm.xlu0 %107, %v58
    %v109 = vpop.permute.xlu0 %108
    %112 = vset.pattern.permute.xlu0 0
    %113 = vperm.xlu0 %112, %v59
    %v114 = vpop.permute.xlu0 %113
    %117 = vset.pattern.permute.xlu0 0
    %118 = vperm.xlu0 %117, %v60
    %v119 = vpop.permute.xlu0 %118
    %122 = vset.pattern.permute.xlu0 0
    %123 = vperm.xlu0 %122, %v61
    %v124 = vpop.permute.xlu0 %123
    %127 = vset.pattern.permute.xlu0 0
    %128 = vperm.xlu0 %127, %v62
    %v129 = vpop.permute.xlu0 %128
    %132 = vset.pattern.permute.xlu0 0
    %133 = vperm.xlu0 %132, %v63
    %v134 = vpop.permute.xlu0 %133
    %137 = vset.pattern.permute.xlu0 0
    %138 = vperm.xlu0 %137, %v64
    %v139 = vpop.permute.xlu0 %138
    %142 = vset.pattern.permute.xlu0 0
    %143 = vperm.xlu0 %142, %v65
    %v144 = vpop.permute.xlu0 %143
    %v162 = vunpack.c.l.b16 %v30
    %v163 = vunpack.c.l.b16 %v31
    %v164 = vunpack.c.l.b16 %v32
    %v165 = vunpack.c.l.b16 %v33
    %v166 = vunpack.c.l.b16 %v34
    %v167 = vunpack.c.l.b16 %v35
    %v168 = vunpack.c.l.b16 %v36
    %v169 = vunpack.c.l.b16 %v37
    %v170 = vunpack.c.l.b16 %v38
    %v171 = vunpack.c.l.b16 %v39
    %v172 = vunpack.c.l.b16 %v40
    %v173 = vunpack.c.l.b16 %v41
    %v174 = vunpack.c.l.b16 %v42
    %v175 = vunpack.c.l.b16 %v43
    %v176 = vunpack.c.l.b16 %v44
    %v177 = vunpack.c.l.b16 %v45
    %v178 = vpack.c.b16 %v163, %v162
    %v179 = vpack.c.b16 %v165, %v164
    %v180 = vpack.c.b16 %v167, %v166
    %v181 = vpack.c.b16 %v169, %v168
    %v182 = vpack.c.b16 %v171, %v170
    %v183 = vpack.c.b16 %v173, %v172
    %v184 = vpack.c.b16 %v175, %v174
    %v185 = vpack.c.b16 %v177, %v176
    %v190 = vunpack.c.l.b16 %v46
    %v191 = vunpack.c.h.b16 %v46
    %v192 = vunpack.c.l.b16 %v47
    %v193 = vunpack.c.h.b16 %v47
    %v194 = vunpack.c.l.b16 %v48
    %v195 = vunpack.c.h.b16 %v48
    %v196 = vunpack.c.l.b16 %v49
    %v197 = vunpack.c.h.b16 %v49
    %v198 = vpack.c.b16 %v192, %v190
    %v199 = vpack.c.b16 %v193, %v191
    %v200 = vpack.c.b16 %v196, %v194
    %v201 = vpack.c.b16 %v197, %v195
    %vm206 = vcmask 261120
    %v208 = vsel %vm206, %v178, 0
    %v211 = vsel %vm206, %v179, 0
    %v214 = vsel %vm206, %v180, 0
    %v217 = vsel %vm206, %v181, 0
    %v220 = vsel %vm206, %v182, 0
    %v223 = vsel %vm206, %v183, 0
    %v226 = vsel %vm206, %v184, 0
    %v229 = vsel %vm206, %v185, 0
    %231 = vmatpush.bf16.msra.mxu0 0
    %232 = vmatpush.bf16.msra.mxu0 0
    %233 = vmatpush.bf16.msra.mxu0 0
    %234 = vmatpush.bf16.msra.mxu0 0
    %235 = vmatpush.bf16.msra.mxu0 0
    %236 = vmatpush.bf16.msra.mxu0 0
    %237 = vmatpush.bf16.msra.mxu0 %v200
    %238 = vmatpush.bf16.msra.mxu0 %v198
    %239 = vmatmul.bf16.gmra.mxu0 %v208
    %v240 = vpop.f32.mrf.mxu0
    %v241 = vadd.f32 %v69, %v240
    %v242 = vpop.f32.mrf.mxu0
    %v243 = vadd.f32 %v74, %v242
    %244 = vmatmul.bf16.gmra.mxu0 %v211
    %v245 = vpop.f32.mrf.mxu0
    %v246 = vadd.f32 %v79, %v245
    %v247 = vpop.f32.mrf.mxu0
    %v248 = vadd.f32 %v84, %v247
    %249 = vmatmul.bf16.gmra.mxu0 %v214
    %v250 = vpop.f32.mrf.mxu0
    %v251 = vadd.f32 %v89, %v250
    %v252 = vpop.f32.mrf.mxu0
    %v253 = vadd.f32 %v94, %v252
    %254 = vmatmul.bf16.gmra.mxu0 %v217
    %v255 = vpop.f32.mrf.mxu0
    %v256 = vadd.f32 %v99, %v255
    %v257 = vpop.f32.mrf.mxu0
    %v258 = vadd.f32 %v104, %v257
    %259 = vmatmul.bf16.gmra.mxu0 %v220
    %v260 = vpop.f32.mrf.mxu0
    %v261 = vadd.f32 %v109, %v260
    %v262 = vpop.f32.mrf.mxu0
    %v263 = vadd.f32 %v114, %v262
    %264 = vmatmul.bf16.gmra.mxu0 %v223
    %v265 = vpop.f32.mrf.mxu0
    %v266 = vadd.f32 %v119, %v265
    %v267 = vpop.f32.mrf.mxu0
    %v268 = vadd.f32 %v124, %v267
    %269 = vmatmul.bf16.gmra.mxu0 %v226
    %v270 = vpop.f32.mrf.mxu0
    %v271 = vadd.f32 %v129, %v270
    %v272 = vpop.f32.mrf.mxu0
    %v273 = vadd.f32 %v134, %v272
    %274 = vmatmul.bf16.gmra.mxu0 %v229
    %v275 = vpop.f32.mrf.mxu0
    %v276 = vadd.f32 %v139, %v275
    %v277 = vpop.f32.mrf.mxu0
    %v278 = vadd.f32 %v144, %v277
    %279 = vdwg.mxu0
    %280 = vmatpush.bf16.msra.mxu0 0
    %281 = vmatpush.bf16.msra.mxu0 0
    %282 = vmatpush.bf16.msra.mxu0 0
    %283 = vmatpush.bf16.msra.mxu0 0
    %284 = vmatpush.bf16.msra.mxu0 0
    %285 = vmatpush.bf16.msra.mxu0 0
    %286 = vmatpush.bf16.msra.mxu0 %v201
    %287 = vmatpush.bf16.msra.mxu0 %v199
    %288 = vmatmul.bf16.gmra.mxu0 %v208
    %v289 = vpop.f32.mrf.mxu0
    %v290 = vadd.f32 %v69, %v289
    %v291 = vpop.f32.mrf.mxu0
    %v292 = vadd.f32 %v74, %v291
    %293 = vmatmul.bf16.gmra.mxu0 %v211
    %v294 = vpop.f32.mrf.mxu0
    %v295 = vadd.f32 %v79, %v294
    %v296 = vpop.f32.mrf.mxu0
    %v297 = vadd.f32 %v84, %v296
    %298 = vmatmul.bf16.gmra.mxu0 %v214
    %v299 = vpop.f32.mrf.mxu0
    %v300 = vadd.f32 %v89, %v299
    %v301 = vpop.f32.mrf.mxu0
    %v302 = vadd.f32 %v94, %v301
    %303 = vmatmul.bf16.gmra.mxu0 %v217
    %v304 = vpop.f32.mrf.mxu0
    %v305 = vadd.f32 %v99, %v304
    %v306 = vpop.f32.mrf.mxu0
    %v307 = vadd.f32 %v104, %v306
    %308 = vmatmul.bf16.gmra.mxu0 %v220
    %v309 = vpop.f32.mrf.mxu0
    %v310 = vadd.f32 %v109, %v309
    %v311 = vpop.f32.mrf.mxu0
    %v312 = vadd.f32 %v114, %v311
    %313 = vmatmul.bf16.gmra.mxu0 %v223
    %v314 = vpop.f32.mrf.mxu0
    %v315 = vadd.f32 %v119, %v314
    %v316 = vpop.f32.mrf.mxu0
    %v317 = vadd.f32 %v124, %v316
    %318 = vmatmul.bf16.gmra.mxu0 %v226
    %v319 = vpop.f32.mrf.mxu0
    %v320 = vadd.f32 %v129, %v319
    %v321 = vpop.f32.mrf.mxu0
    %v322 = vadd.f32 %v134, %v321
    %323 = vmatmul.bf16.gmra.mxu0 %v229
    %v324 = vpop.f32.mrf.mxu0
    %v325 = vadd.f32 %v139, %v324
    %v326 = vpop.f32.mrf.mxu0
    %v327 = vadd.f32 %v144, %v326
    %328 = vdwg.mxu0
    %v329 = vld [vmem:[%s3] sm:$0xf]
    %v330 = vld [vmem:[%s3 + $0x4] sm:$0xf]
    %v331 = vld [vmem:[%s3 + $0x8] sm:$0xf]
    %v332 = vld [vmem:[%s3 + $0xc] sm:$0xf]
    %v333 = vld [vmem:[%s3 + $0x10] sm:$0xf]
    %v334 = vld [vmem:[%s3 + $0x14] sm:$0xf]
    %v335 = vld [vmem:[%s3 + $0x18] sm:$0xf]
    %v336 = vld [vmem:[%s3 + $0x1c] sm:$0xf]
    %v337 = vld [vmem:[%s3 + $0x20] sm:$0xf]
    %v338 = vld [vmem:[%s3 + $0x24] sm:$0xf]
    %v339 = vld [vmem:[%s3 + $0x28] sm:$0xf]
    %v340 = vld [vmem:[%s3 + $0x2c] sm:$0xf]
    %v341 = vld [vmem:[%s3 + $0x30] sm:$0xf]
    %v342 = vld [vmem:[%s3 + $0x34] sm:$0xf]
    %v343 = vld [vmem:[%s3 + $0x38] sm:$0xf]
    %v344 = vld [vmem:[%s3 + $0x3c] sm:$0xf]
    %v345 = vpack.c.bf16 %v243, %v241
    %v346 = vpack.c.bf16 %v292, %v290
    %v347 = vpack.c.bf16 %v248, %v246
    %v348 = vpack.c.bf16 %v297, %v295
    %v349 = vpack.c.bf16 %v253, %v251
    %v350 = vpack.c.bf16 %v302, %v300
    %v351 = vpack.c.bf16 %v258, %v256
    %v352 = vpack.c.bf16 %v307, %v305
    %v353 = vpack.c.bf16 %v263, %v261
    %v354 = vpack.c.bf16 %v312, %v310
    %v355 = vpack.c.bf16 %v268, %v266
    %v356 = vpack.c.bf16 %v317, %v315
    %v357 = vpack.c.bf16 %v273, %v271
    %v358 = vpack.c.bf16 %v322, %v320
    %v359 = vpack.c.bf16 %v278, %v276
    %v360 = vpack.c.bf16 %v327, %v325
    %v361 = vld [vmem:[%s4] sm:$0xff]
    %v362 = vld [vmem:[%s4 + $0x8] sm:$0xff]
    %v363 = vld [vmem:[%s4 + $0x10] sm:$0xff]
    %v364 = vld [vmem:[%s4 + $0x18] sm:$0xff]
    %v365 = vld [vmem:[%s4 + $0x20] sm:$0xff]
    %v366 = vld [vmem:[%s4 + $0x28] sm:$0xff]
    %v367 = vld [vmem:[%s4 + $0x30] sm:$0xff]
    %v368 = vld [vmem:[%s4 + $0x38] sm:$0xff]
    %v369 = vld [vmem:[%s4 + $0x40] sm:$0xff]
    %v370 = vld [vmem:[%s4 + $0x48] sm:$0xff]
    %v371 = vld [vmem:[%s4 + $0x50] sm:$0xff]
    %v372 = vld [vmem:[%s4 + $0x58] sm:$0xff]
    %v373 = vld [vmem:[%s4 + $0x60] sm:$0xff]
    %v374 = vld [vmem:[%s4 + $0x68] sm:$0xff]
    %v375 = vld [vmem:[%s4 + $0x70] sm:$0xff]
    %v376 = vld [vmem:[%s4 + $0x78] sm:$0xff]
    %378 = vset.pattern.permute.xlu0 0
    %379 = vperm.xlu0 %378, %v361
    %v380 = vpop.permute.xlu0 %379
    %383 = vset.pattern.permute.xlu0 0
    %384 = vperm.xlu0 %383, %v362
    %v385 = vpop.permute.xlu0 %384
    %388 = vset.pattern.permute.xlu0 0
    %389 = vperm.xlu0 %388, %v363
    %v390 = vpop.permute.xlu0 %389
    %393 = vset.pattern.permute.xlu0 0
    %394 = vperm.xlu0 %393, %v364
    %v395 = vpop.permute.xlu0 %394
    %398 = vset.pattern.permute.xlu0 0
    %399 = vperm.xlu0 %398, %v365
    %v400 = vpop.permute.xlu0 %399
    %403 = vset.pattern.permute.xlu0 0
    %404 = vperm.xlu0 %403, %v366
    %v405 = vpop.permute.xlu0 %404
    %408 = vset.pattern.permute.xlu0 0
    %409 = vperm.xlu0 %408, %v367
    %v410 = vpop.permute.xlu0 %409
    %413 = vset.pattern.permute.xlu0 0
    %414 = vperm.xlu0 %413, %v368
    %v415 = vpop.permute.xlu0 %414
    %418 = vset.pattern.permute.xlu0 0
    %419 = vperm.xlu0 %418, %v369
    %v420 = vpop.permute.xlu0 %419
    %423 = vset.pattern.permute.xlu0 0
    %424 = vperm.xlu0 %423, %v370
    %v425 = vpop.permute.xlu0 %424
    %428 = vset.pattern.permute.xlu0 0
    %429 = vperm.xlu0 %428, %v371
    %v430 = vpop.permute.xlu0 %429
    %433 = vset.pattern.permute.xlu0 0
    %434 = vperm.xlu0 %433, %v372
    %v435 = vpop.permute.xlu0 %434
    %438 = vset.pattern.permute.xlu0 0
    %439 = vperm.xlu0 %438, %v373
    %v440 = vpop.permute.xlu0 %439
    %443 = vset.pattern.permute.xlu0 0
    %444 = vperm.xlu0 %443, %v374
    %v445 = vpop.permute.xlu0 %444
    %448 = vset.pattern.permute.xlu0 0
    %449 = vperm.xlu0 %448, %v375
    %v450 = vpop.permute.xlu0 %449
    %453 = vset.pattern.permute.xlu0 0
    %454 = vperm.xlu0 %453, %v376
    %v455 = vpop.permute.xlu0 %454
    %v473 = vunpack.c.l.b16 %v329
    %v474 = vunpack.c.l.b16 %v330
    %v475 = vunpack.c.l.b16 %v331
    %v476 = vunpack.c.l.b16 %v332
    %v477 = vunpack.c.l.b16 %v333
    %v478 = vunpack.c.l.b16 %v334
    %v479 = vunpack.c.l.b16 %v335
    %v480 = vunpack.c.l.b16 %v336
    %v481 = vunpack.c.l.b16 %v337
    %v482 = vunpack.c.l.b16 %v338
    %v483 = vunpack.c.l.b16 %v339
    %v484 = vunpack.c.l.b16 %v340
    %v485 = vunpack.c.l.b16 %v341
    %v486 = vunpack.c.l.b16 %v342
    %v487 = vunpack.c.l.b16 %v343
    %v488 = vunpack.c.l.b16 %v344
    %v489 = vpack.c.b16 %v474, %v473
    %v490 = vpack.c.b16 %v476, %v475
    %v491 = vpack.c.b16 %v478, %v477
    %v492 = vpack.c.b16 %v480, %v479
    %v493 = vpack.c.b16 %v482, %v481
    %v494 = vpack.c.b16 %v484, %v483
    %v495 = vpack.c.b16 %v486, %v485
    %v496 = vpack.c.b16 %v488, %v487
    %505 = vmatpush.bf16.msra.mxu0 %v359
    %506 = vmatpush.bf16.msra.mxu0 %v357
    %507 = vmatpush.bf16.msra.mxu0 %v355
    %508 = vmatpush.bf16.msra.mxu0 %v353
    %509 = vmatpush.bf16.msra.mxu0 %v351
    %510 = vmatpush.bf16.msra.mxu0 %v349
    %511 = vmatpush.bf16.msra.mxu0 %v347
    %512 = vmatpush.bf16.msra.mxu0 %v345
    %513 = vmatmul.bf16.gmra.mxu0 %v489
    %v514 = vpop.f32.mrf.mxu0
    %v515 = vadd.f32 %v380, %v514
    %v516 = vpop.f32.mrf.mxu0
    %v517 = vadd.f32 %v385, %v516
    %518 = vmatmul.bf16.gmra.mxu0 %v490
    %v519 = vpop.f32.mrf.mxu0
    %v520 = vadd.f32 %v390, %v519
    %v521 = vpop.f32.mrf.mxu0
    %v522 = vadd.f32 %v395, %v521
    %523 = vmatmul.bf16.gmra.mxu0 %v491
    %v524 = vpop.f32.mrf.mxu0
    %v525 = vadd.f32 %v400, %v524
    %v526 = vpop.f32.mrf.mxu0
    %v527 = vadd.f32 %v405, %v526
    %528 = vmatmul.bf16.gmra.mxu0 %v492
    %v529 = vpop.f32.mrf.mxu0
    %v530 = vadd.f32 %v410, %v529
    %v531 = vpop.f32.mrf.mxu0
    %v532 = vadd.f32 %v415, %v531
    %533 = vmatmul.bf16.gmra.mxu0 %v493
    %v534 = vpop.f32.mrf.mxu0
    %v535 = vadd.f32 %v420, %v534
    %v536 = vpop.f32.mrf.mxu0
    %v537 = vadd.f32 %v425, %v536
    %538 = vmatmul.bf16.gmra.mxu0 %v494
    %v539 = vpop.f32.mrf.mxu0
    %v540 = vadd.f32 %v430, %v539
    %v541 = vpop.f32.mrf.mxu0
    %v542 = vadd.f32 %v435, %v541
    %543 = vmatmul.bf16.gmra.mxu0 %v495
    %v544 = vpop.f32.mrf.mxu0
    %v545 = vadd.f32 %v440, %v544
    %v546 = vpop.f32.mrf.mxu0
    %v547 = vadd.f32 %v445, %v546
    %548 = vmatmul.bf16.gmra.mxu0 %v496
    %v549 = vpop.f32.mrf.mxu0
    %v550 = vadd.f32 %v450, %v549
    %v551 = vpop.f32.mrf.mxu0
    %v552 = vadd.f32 %v455, %v551
    %553 = vdwg.mxu0
    %554 = vmatpush.bf16.msra.mxu0 %v360
    %555 = vmatpush.bf16.msra.mxu0 %v358
    %556 = vmatpush.bf16.msra.mxu0 %v356
    %557 = vmatpush.bf16.msra.mxu0 %v354
    %558 = vmatpush.bf16.msra.mxu0 %v352
    %559 = vmatpush.bf16.msra.mxu0 %v350
    %560 = vmatpush.bf16.msra.mxu0 %v348
    %561 = vmatpush.bf16.msra.mxu0 %v346
    %562 = vmatmul.bf16.gmra.mxu0 %v489
    %v563 = vpop.f32.mrf.mxu0
    %v564 = vadd.f32 %v380, %v563
    %v565 = vpop.f32.mrf.mxu0
    %v566 = vadd.f32 %v385, %v565
    %567 = vmatmul.bf16.gmra.mxu0 %v490
    %v568 = vpop.f32.mrf.mxu0
    %v569 = vadd.f32 %v390, %v568
    %v570 = vpop.f32.mrf.mxu0
    %v571 = vadd.f32 %v395, %v570
    %572 = vmatmul.bf16.gmra.mxu0 %v491
    %v573 = vpop.f32.mrf.mxu0
    %v574 = vadd.f32 %v400, %v573
    %v575 = vpop.f32.mrf.mxu0
    %v576 = vadd.f32 %v405, %v575
    %577 = vmatmul.bf16.gmra.mxu0 %v492
    %v578 = vpop.f32.mrf.mxu0
    %v579 = vadd.f32 %v410, %v578
    %v580 = vpop.f32.mrf.mxu0
    %v581 = vadd.f32 %v415, %v580
    %582 = vmatmul.bf16.gmra.mxu0 %v493
    %v583 = vpop.f32.mrf.mxu0
    %v584 = vadd.f32 %v420, %v583
    %v585 = vpop.f32.mrf.mxu0
    %v586 = vadd.f32 %v425, %v585
    %587 = vmatmul.bf16.gmra.mxu0 %v494
    %v588 = vpop.f32.mrf.mxu0
    %v589 = vadd.f32 %v430, %v588
    %v590 = vpop.f32.mrf.mxu0
    %v591 = vadd.f32 %v435, %v590
    %592 = vmatmul.bf16.gmra.mxu0 %v495
    %v593 = vpop.f32.mrf.mxu0
    %v594 = vadd.f32 %v440, %v593
    %v595 = vpop.f32.mrf.mxu0
    %v596 = vadd.f32 %v445, %v595
    %597 = vmatmul.bf16.gmra.mxu0 %v496
    %v598 = vpop.f32.mrf.mxu0
    %v599 = vadd.f32 %v450, %v598
    %v600 = vpop.f32.mrf.mxu0
    %v601 = vadd.f32 %v455, %v600
    %602 = vdwg.mxu0
    %v603 = vmax.f32 %v515, 0.0
    %v604 = vmax.f32 %v564, 0.0
    %v605 = vmax.f32 %v517, 0.0
    %v606 = vmax.f32 %v566, 0.0
    %v607 = vmax.f32 %v520, 0.0
    %v608 = vmax.f32 %v569, 0.0
    %v609 = vmax.f32 %v522, 0.0
    %v610 = vmax.f32 %v571, 0.0
    %v611 = vmax.f32 %v525, 0.0
    %v612 = vmax.f32 %v574, 0.0
    %v613 = vmax.f32 %v527, 0.0
    %v614 = vmax.f32 %v576, 0.0
    %v615 = vmax.f32 %v530, 0.0
    %v616 = vmax.f32 %v579, 0.0
    %v617 = vmax.f32 %v532, 0.0
    %v618 = vmax.f32 %v581, 0.0
    %v619 = vmax.f32 %v535, 0.0
    %v620 = vmax.f32 %v584, 0.0
    %v621 = vmax.f32 %v537, 0.0
    %v622 = vmax.f32 %v586, 0.0
    %v623 = vmax.f32 %v540, 0.0
    %v624 = vmax.f32 %v589, 0.0
    %v625 = vmax.f32 %v542, 0.0
    %v626 = vmax.f32 %v591, 0.0
    %v627 = vmax.f32 %v545, 0.0
    %v628 = vmax.f32 %v594, 0.0
    %v629 = vmax.f32 %v547, 0.0
    %v630 = vmax.f32 %v596, 0.0
    %v631 = vmax.f32 %v550, 0.0
    %v632 = vmax.f32 %v599, 0.0
    %v633 = vmax.f32 %v552, 0.0
    %v634 = vmax.f32 %v601, 0.0
    %s635 = scalar_lea.vmem %s3, 64
    %v636 = vld [vmem:[%s635] sm:$0xf]
    %v637 = vld [vmem:[%s635 + $0x4] sm:$0xf]
    %v638 = vld [vmem:[%s635 + $0x8] sm:$0xf]
    %v639 = vld [vmem:[%s635 + $0xc] sm:$0xf]
    %v640 = vld [vmem:[%s635 + $0x10] sm:$0xf]
    %v641 = vld [vmem:[%s635 + $0x14] sm:$0xf]
    %v642 = vld [vmem:[%s635 + $0x18] sm:$0xf]
    %v643 = vld [vmem:[%s635 + $0x1c] sm:$0xf]
    %v644 = vld [vmem:[%s635 + $0x20] sm:$0xf]
    %v645 = vld [vmem:[%s635 + $0x24] sm:$0xf]
    %v646 = vld [vmem:[%s635 + $0x28] sm:$0xf]
    %v647 = vld [vmem:[%s635 + $0x2c] sm:$0xf]
    %v648 = vld [vmem:[%s635 + $0x30] sm:$0xf]
    %v649 = vld [vmem:[%s635 + $0x34] sm:$0xf]
    %v650 = vld [vmem:[%s635 + $0x38] sm:$0xf]
    %v651 = vld [vmem:[%s635 + $0x3c] sm:$0xf]
    %v652 = vpack.c.bf16 %v605, %v603
    %v653 = vpack.c.bf16 %v606, %v604
    %v654 = vpack.c.bf16 %v609, %v607
    %v655 = vpack.c.bf16 %v610, %v608
    %v656 = vpack.c.bf16 %v613, %v611
    %v657 = vpack.c.bf16 %v614, %v612
    %v658 = vpack.c.bf16 %v617, %v615
    %v659 = vpack.c.bf16 %v618, %v616
    %v660 = vpack.c.bf16 %v621, %v619
    %v661 = vpack.c.bf16 %v622, %v620
    %v662 = vpack.c.bf16 %v625, %v623
    %v663 = vpack.c.bf16 %v626, %v624
    %v664 = vpack.c.bf16 %v629, %v627
    %v665 = vpack.c.bf16 %v630, %v628
    %v666 = vpack.c.bf16 %v633, %v631
    %v667 = vpack.c.bf16 %v634, %v632
    %s668 = scalar_lea.vmem %s4, 128
    %v669 = vld [vmem:[%s668] sm:$0xff]
    %v670 = vld [vmem:[%s668 + $0x8] sm:$0xff]
    %v671 = vld [vmem:[%s668 + $0x10] sm:$0xff]
    %v672 = vld [vmem:[%s668 + $0x18] sm:$0xff]
    %v673 = vld [vmem:[%s668 + $0x20] sm:$0xff]
    %v674 = vld [vmem:[%s668 + $0x28] sm:$0xff]
    %v675 = vld [vmem:[%s668 + $0x30] sm:$0xff]
    %v676 = vld [vmem:[%s668 + $0x38] sm:$0xff]
    %v677 = vld [vmem:[%s668 + $0x40] sm:$0xff]
    %v678 = vld [vmem:[%s668 + $0x48] sm:$0xff]
    %v679 = vld [vmem:[%s668 + $0x50] sm:$0xff]
    %v680 = vld [vmem:[%s668 + $0x58] sm:$0xff]
    %v681 = vld [vmem:[%s668 + $0x60] sm:$0xff]
    %v682 = vld [vmem:[%s668 + $0x68] sm:$0xff]
    %v683 = vld [vmem:[%s668 + $0x70] sm:$0xff]
    %v684 = vld [vmem:[%s668 + $0x78] sm:$0xff]
    %686 = vset.pattern.permute.xlu0 0
    %687 = vperm.xlu0 %686, %v669
    %v688 = vpop.permute.xlu0 %687
    %691 = vset.pattern.permute.xlu0 0
    %692 = vperm.xlu0 %691, %v670
    %v693 = vpop.permute.xlu0 %692
    %696 = vset.pattern.permute.xlu0 0
    %697 = vperm.xlu0 %696, %v671
    %v698 = vpop.permute.xlu0 %697
    %701 = vset.pattern.permute.xlu0 0
    %702 = vperm.xlu0 %701, %v672
    %v703 = vpop.permute.xlu0 %702
    %706 = vset.pattern.permute.xlu0 0
    %707 = vperm.xlu0 %706, %v673
    %v708 = vpop.permute.xlu0 %707
    %711 = vset.pattern.permute.xlu0 0
    %712 = vperm.xlu0 %711, %v674
    %v713 = vpop.permute.xlu0 %712
    %716 = vset.pattern.permute.xlu0 0
    %717 = vperm.xlu0 %716, %v675
    %v718 = vpop.permute.xlu0 %717
    %721 = vset.pattern.permute.xlu0 0
    %722 = vperm.xlu0 %721, %v676
    %v723 = vpop.permute.xlu0 %722
    %726 = vset.pattern.permute.xlu0 0
    %727 = vperm.xlu0 %726, %v677
    %v728 = vpop.permute.xlu0 %727
    %731 = vset.pattern.permute.xlu0 0
    %732 = vperm.xlu0 %731, %v678
    %v733 = vpop.permute.xlu0 %732
    %736 = vset.pattern.permute.xlu0 0
    %737 = vperm.xlu0 %736, %v679
    %v738 = vpop.permute.xlu0 %737
    %741 = vset.pattern.permute.xlu0 0
    %742 = vperm.xlu0 %741, %v680
    %v743 = vpop.permute.xlu0 %742
    %746 = vset.pattern.permute.xlu0 0
    %747 = vperm.xlu0 %746, %v681
    %v748 = vpop.permute.xlu0 %747
    %751 = vset.pattern.permute.xlu0 0
    %752 = vperm.xlu0 %751, %v682
    %v753 = vpop.permute.xlu0 %752
    %756 = vset.pattern.permute.xlu0 0
    %757 = vperm.xlu0 %756, %v683
    %v758 = vpop.permute.xlu0 %757
    %761 = vset.pattern.permute.xlu0 0
    %762 = vperm.xlu0 %761, %v684
    %v763 = vpop.permute.xlu0 %762
    %v781 = vunpack.c.l.b16 %v636
    %v782 = vunpack.c.l.b16 %v637
    %v783 = vunpack.c.l.b16 %v638
    %v784 = vunpack.c.l.b16 %v639
    %v785 = vunpack.c.l.b16 %v640
    %v786 = vunpack.c.l.b16 %v641
    %v787 = vunpack.c.l.b16 %v642
    %v788 = vunpack.c.l.b16 %v643
    %v789 = vunpack.c.l.b16 %v644
    %v790 = vunpack.c.l.b16 %v645
    %v791 = vunpack.c.l.b16 %v646
    %v792 = vunpack.c.l.b16 %v647
    %v793 = vunpack.c.l.b16 %v648
    %v794 = vunpack.c.l.b16 %v649
    %v795 = vunpack.c.l.b16 %v650
    %v796 = vunpack.c.l.b16 %v651
    %v797 = vpack.c.b16 %v782, %v781
    %v798 = vpack.c.b16 %v784, %v783
    %v799 = vpack.c.b16 %v786, %v785
    %v800 = vpack.c.b16 %v788, %v787
    %v801 = vpack.c.b16 %v790, %v789
    %v802 = vpack.c.b16 %v792, %v791
    %v803 = vpack.c.b16 %v794, %v793
    %v804 = vpack.c.b16 %v796, %v795
    %813 = vmatpush.bf16.msra.mxu0 %v666
    %814 = vmatpush.bf16.msra.mxu0 %v664
    %815 = vmatpush.bf16.msra.mxu0 %v662
    %816 = vmatpush.bf16.msra.mxu0 %v660
    %817 = vmatpush.bf16.msra.mxu0 %v658
    %818 = vmatpush.bf16.msra.mxu0 %v656
    %819 = vmatpush.bf16.msra.mxu0 %v654
    %820 = vmatpush.bf16.msra.mxu0 %v652
    %821 = vmatmul.bf16.gmra.mxu0 %v797
    %v822 = vpop.f32.mrf.mxu0
    %v823 = vadd.f32 %v688, %v822
    %v824 = vpop.f32.mrf.mxu0
    %v825 = vadd.f32 %v693, %v824
    %826 = vmatmul.bf16.gmra.mxu0 %v798
    %v827 = vpop.f32.mrf.mxu0
    %v828 = vadd.f32 %v698, %v827
    %v829 = vpop.f32.mrf.mxu0
    %v830 = vadd.f32 %v703, %v829
    %831 = vmatmul.bf16.gmra.mxu0 %v799
    %v832 = vpop.f32.mrf.mxu0
    %v833 = vadd.f32 %v708, %v832
    %v834 = vpop.f32.mrf.mxu0
    %v835 = vadd.f32 %v713, %v834
    %836 = vmatmul.bf16.gmra.mxu0 %v800
    %v837 = vpop.f32.mrf.mxu0
    %v838 = vadd.f32 %v718, %v837
    %v839 = vpop.f32.mrf.mxu0
    %v840 = vadd.f32 %v723, %v839
    %841 = vmatmul.bf16.gmra.mxu0 %v801
    %v842 = vpop.f32.mrf.mxu0
    %v843 = vadd.f32 %v728, %v842
    %v844 = vpop.f32.mrf.mxu0
    %v845 = vadd.f32 %v733, %v844
    %846 = vmatmul.bf16.gmra.mxu0 %v802
    %v847 = vpop.f32.mrf.mxu0
    %v848 = vadd.f32 %v738, %v847
    %v849 = vpop.f32.mrf.mxu0
    %v850 = vadd.f32 %v743, %v849
    %851 = vmatmul.bf16.gmra.mxu0 %v803
    %v852 = vpop.f32.mrf.mxu0
    %v853 = vadd.f32 %v748, %v852
    %v854 = vpop.f32.mrf.mxu0
    %v855 = vadd.f32 %v753, %v854
    %856 = vmatmul.bf16.gmra.mxu0 %v804
    %v857 = vpop.f32.mrf.mxu0
    %v858 = vadd.f32 %v758, %v857
    %v859 = vpop.f32.mrf.mxu0
    %v860 = vadd.f32 %v763, %v859
    %861 = vdwg.mxu0
    %862 = vmatpush.bf16.msra.mxu0 %v667
    %863 = vmatpush.bf16.msra.mxu0 %v665
    %864 = vmatpush.bf16.msra.mxu0 %v663
    %865 = vmatpush.bf16.msra.mxu0 %v661
    %866 = vmatpush.bf16.msra.mxu0 %v659
    %867 = vmatpush.bf16.msra.mxu0 %v657
    %868 = vmatpush.bf16.msra.mxu0 %v655
    %869 = vmatpush.bf16.msra.mxu0 %v653
    %870 = vmatmul.bf16.gmra.mxu0 %v797
    %v871 = vpop.f32.mrf.mxu0
    %v872 = vadd.f32 %v688, %v871
    %v873 = vpop.f32.mrf.mxu0
    %v874 = vadd.f32 %v693, %v873
    %875 = vmatmul.bf16.gmra.mxu0 %v798
    %v876 = vpop.f32.mrf.mxu0
    %v877 = vadd.f32 %v698, %v876
    %v878 = vpop.f32.mrf.mxu0
    %v879 = vadd.f32 %v703, %v878
    %880 = vmatmul.bf16.gmra.mxu0 %v799
    %v881 = vpop.f32.mrf.mxu0
    %v882 = vadd.f32 %v708, %v881
    %v883 = vpop.f32.mrf.mxu0
    %v884 = vadd.f32 %v713, %v883
    %885 = vmatmul.bf16.gmra.mxu0 %v800
    %v886 = vpop.f32.mrf.mxu0
    %v887 = vadd.f32 %v718, %v886
    %v888 = vpop.f32.mrf.mxu0
    %v889 = vadd.f32 %v723, %v888
    %890 = vmatmul.bf16.gmra.mxu0 %v801
    %v891 = vpop.f32.mrf.mxu0
    %v892 = vadd.f32 %v728, %v891
    %v893 = vpop.f32.mrf.mxu0
    %v894 = vadd.f32 %v733, %v893
    %895 = vmatmul.bf16.gmra.mxu0 %v802
    %v896 = vpop.f32.mrf.mxu0
    %v897 = vadd.f32 %v738, %v896
    %v898 = vpop.f32.mrf.mxu0
    %v899 = vadd.f32 %v743, %v898
    %900 = vmatmul.bf16.gmra.mxu0 %v803
    %v901 = vpop.f32.mrf.mxu0
    %v902 = vadd.f32 %v748, %v901
    %v903 = vpop.f32.mrf.mxu0
    %v904 = vadd.f32 %v753, %v903
    %905 = vmatmul.bf16.gmra.mxu0 %v804
    %v906 = vpop.f32.mrf.mxu0
    %v907 = vadd.f32 %v758, %v906
    %v908 = vpop.f32.mrf.mxu0
    %v909 = vadd.f32 %v763, %v908
    %910 = vdwg.mxu0
    %v911 = vmax.f32 %v823, 0.0
    %v912 = vmax.f32 %v872, 0.0
    %v913 = vmax.f32 %v825, 0.0
    %v914 = vmax.f32 %v874, 0.0
    %v915 = vmax.f32 %v828, 0.0
    %v916 = vmax.f32 %v877, 0.0
    %v917 = vmax.f32 %v830, 0.0
    %v918 = vmax.f32 %v879, 0.0
    %v919 = vmax.f32 %v833, 0.0
    %v920 = vmax.f32 %v882, 0.0
    %v921 = vmax.f32 %v835, 0.0
    %v922 = vmax.f32 %v884, 0.0
    %v923 = vmax.f32 %v838, 0.0
    %v924 = vmax.f32 %v887, 0.0
    %v925 = vmax.f32 %v840, 0.0
    %v926 = vmax.f32 %v889, 0.0
    %v927 = vmax.f32 %v843, 0.0
    %v928 = vmax.f32 %v892, 0.0
    %v929 = vmax.f32 %v845, 0.0
    %v930 = vmax.f32 %v894, 0.0
    %v931 = vmax.f32 %v848, 0.0
    %v932 = vmax.f32 %v897, 0.0
    %v933 = vmax.f32 %v850, 0.0
    %v934 = vmax.f32 %v899, 0.0
    %v935 = vmax.f32 %v853, 0.0
    %v936 = vmax.f32 %v902, 0.0
    %v937 = vmax.f32 %v855, 0.0
    %v938 = vmax.f32 %v904, 0.0
    %v939 = vmax.f32 %v858, 0.0
    %v940 = vmax.f32 %v907, 0.0
    %v941 = vmax.f32 %v860, 0.0
    %v942 = vmax.f32 %v909, 0.0
    %v943 = vld [vmem:[%s5] sm:$0xff]
    %v944 = vld [vmem:[%s5 + $0x8] sm:$0xff]
    %v945 = vld [vmem:[%s5 + $0x10] sm:$0xff]
    %v946 = vld [vmem:[%s5 + $0x18] sm:$0xff]
    %v947 = vld [vmem:[%s5 + $0x20] sm:$0xff]
    %v948 = vld [vmem:[%s5 + $0x28] sm:$0xff]
    %v949 = vld [vmem:[%s5 + $0x30] sm:$0xff]
    %v950 = vld [vmem:[%s5 + $0x38] sm:$0xff]
    %v951 = vld [vmem:[%s5 + $0x40] sm:$0xff]
    %v952 = vld [vmem:[%s5 + $0x48] sm:$0xff]
    %v953 = vld [vmem:[%s5 + $0x50] sm:$0xff]
    %v954 = vld [vmem:[%s5 + $0x58] sm:$0xff]
    %v955 = vld [vmem:[%s5 + $0x60] sm:$0xff]
    %v956 = vld [vmem:[%s5 + $0x68] sm:$0xff]
    %v957 = vld [vmem:[%s5 + $0x70] sm:$0xff]
    %v958 = vld [vmem:[%s5 + $0x78] sm:$0xff]
    %960 = vset.pattern.permute.xlu0 0
    %961 = vperm.xlu0 %960, %v943
    %v962 = vpop.permute.xlu0 %961
    %965 = vset.pattern.permute.xlu0 0
    %966 = vperm.xlu0 %965, %v944
    %v967 = vpop.permute.xlu0 %966
    %970 = vset.pattern.permute.xlu0 0
    %971 = vperm.xlu0 %970, %v945
    %v972 = vpop.permute.xlu0 %971
    %975 = vset.pattern.permute.xlu0 0
    %976 = vperm.xlu0 %975, %v946
    %v977 = vpop.permute.xlu0 %976
    %980 = vset.pattern.permute.xlu0 0
    %981 = vperm.xlu0 %980, %v947
    %v982 = vpop.permute.xlu0 %981
    %985 = vset.pattern.permute.xlu0 0
    %986 = vperm.xlu0 %985, %v948
    %v987 = vpop.permute.xlu0 %986
    %990 = vset.pattern.permute.xlu0 0
    %991 = vperm.xlu0 %990, %v949
    %v992 = vpop.permute.xlu0 %991
    %995 = vset.pattern.permute.xlu0 0
    %996 = vperm.xlu0 %995, %v950
    %v997 = vpop.permute.xlu0 %996
    %1000 = vset.pattern.permute.xlu0 0
    %1001 = vperm.xlu0 %1000, %v951
    %v1002 = vpop.permute.xlu0 %1001
    %1005 = vset.pattern.permute.xlu0 0
    %1006 = vperm.xlu0 %1005, %v952
    %v1007 = vpop.permute.xlu0 %1006
    %1010 = vset.pattern.permute.xlu0 0
    %1011 = vperm.xlu0 %1010, %v953
    %v1012 = vpop.permute.xlu0 %1011
    %1015 = vset.pattern.permute.xlu0 0
    %1016 = vperm.xlu0 %1015, %v954
    %v1017 = vpop.permute.xlu0 %1016
    %1020 = vset.pattern.permute.xlu0 0
    %1021 = vperm.xlu0 %1020, %v955
    %v1022 = vpop.permute.xlu0 %1021
    %1025 = vset.pattern.permute.xlu0 0
    %1026 = vperm.xlu0 %1025, %v956
    %v1027 = vpop.permute.xlu0 %1026
    %1030 = vset.pattern.permute.xlu0 0
    %1031 = vperm.xlu0 %1030, %v957
    %v1032 = vpop.permute.xlu0 %1031
    %1035 = vset.pattern.permute.xlu0 0
    %1036 = vperm.xlu0 %1035, %v958
    %v1037 = vpop.permute.xlu0 %1036
    %v1039 = vmul.f32 %v911, %v962
    %v1040 = vmul.f32 %v912, %v962
    %v1041 = vmul.f32 %v913, %v967
    %v1042 = vmul.f32 %v914, %v967
    %v1043 = vmul.f32 %v915, %v972
    %v1044 = vmul.f32 %v916, %v972
    %v1045 = vmul.f32 %v917, %v977
    %v1046 = vmul.f32 %v918, %v977
    %v1047 = vmul.f32 %v919, %v982
    %v1048 = vmul.f32 %v920, %v982
    %v1049 = vmul.f32 %v921, %v987
    %v1050 = vmul.f32 %v922, %v987
    %v1051 = vmul.f32 %v923, %v992
    %v1052 = vmul.f32 %v924, %v992
    %v1053 = vmul.f32 %v925, %v997
    %v1054 = vmul.f32 %v926, %v997
    %v1055 = vmul.f32 %v927, %v1002
    %v1056 = vmul.f32 %v928, %v1002
    %v1057 = vmul.f32 %v929, %v1007
    %v1058 = vmul.f32 %v930, %v1007
    %v1059 = vmul.f32 %v931, %v1012
    %v1060 = vmul.f32 %v932, %v1012
    %v1061 = vmul.f32 %v933, %v1017
    %v1062 = vmul.f32 %v934, %v1017
    %v1063 = vmul.f32 %v935, %v1022
    %v1064 = vmul.f32 %v936, %v1022
    %v1065 = vmul.f32 %v937, %v1027
    %v1066 = vmul.f32 %v938, %v1027
    %v1067 = vmul.f32 %v939, %v1032
    %v1068 = vmul.f32 %v940, %v1032
    %v1069 = vmul.f32 %v941, %v1037
    %v1070 = vmul.f32 %v942, %v1037
    %v1071 = vadd.f32 %v1039, %v1041
    %v1072 = vadd.f32 %v1071, %v1043
    %v1073 = vadd.f32 %v1072, %v1045
    %v1074 = vadd.f32 %v1073, %v1047
    %v1075 = vadd.f32 %v1074, %v1049
    %v1076 = vadd.f32 %v1075, %v1051
    %v1077 = vadd.f32 %v1076, %v1053
    %v1078 = vadd.f32 %v1077, %v1055
    %v1079 = vadd.f32 %v1078, %v1057
    %v1080 = vadd.f32 %v1079, %v1059
    %v1081 = vadd.f32 %v1080, %v1061
    %v1082 = vadd.f32 %v1081, %v1063
    %v1083 = vadd.f32 %v1082, %v1065
    %v1084 = vadd.f32 %v1083, %v1067
    %v1085 = vadd.f32 %v1084, %v1069
    %v1086 = vrot.slane %v1085, 4
    %v1087 = vadd.f32 %v1085, %v1086
    %v1088 = vrot.slane %v1087, 2
    %v1089 = vadd.f32 %v1087, %v1088
    %v1090 = vrot.slane %v1089, 1
    %v1091 = vadd.f32 %v1089, %v1090
    %v1092 = vadd.f32 %v1040, %v1042
    %v1093 = vadd.f32 %v1092, %v1044
    %v1094 = vadd.f32 %v1093, %v1046
    %v1095 = vadd.f32 %v1094, %v1048
    %v1096 = vadd.f32 %v1095, %v1050
    %v1097 = vadd.f32 %v1096, %v1052
    %v1098 = vadd.f32 %v1097, %v1054
    %v1099 = vadd.f32 %v1098, %v1056
    %v1100 = vadd.f32 %v1099, %v1058
    %v1101 = vadd.f32 %v1100, %v1060
    %v1102 = vadd.f32 %v1101, %v1062
    %v1103 = vadd.f32 %v1102, %v1064
    %v1104 = vadd.f32 %v1103, %v1066
    %v1105 = vadd.f32 %v1104, %v1068
    %v1106 = vadd.f32 %v1105, %v1070
    %v1107 = vrot.slane %v1106, 4
    %v1108 = vadd.f32 %v1106, %v1107
    %v1109 = vrot.slane %v1108, 2
    %v1110 = vadd.f32 %v1108, %v1109
    %v1111 = vrot.slane %v1110, 1
    %v1112 = vadd.f32 %v1110, %v1111
    %v1113 = vld [vmem:[#allocation2] sm:$0x1]
    %1115 = vset.pattern.permute.xlu0 0
    %1116 = vperm.xlu0 %1115, %v1113
    %v1117 = vpop.permute.xlu0 %1116
    %v1119 = vperm.slane %v1117, 0
    %v1120 = vadd.f32 %v1091, %v1119
    %v1121 = vadd.f32 %v1112, %v1119
    %v1124 = vrot.slane %v1121, 7
    %vm1125 = vcmask 1040384
    %v1126 = vsel %vm1125, %v1120, %v1124
    %v1128 = vlaneseq
    %vm1129 = vcmp.ge.s32.totalorder %v1128, 0
    %vm1130 = vcmp.lt.s32.totalorder %v1128, 256
    %vm1131 = vmand %vm1129, %vm1130
    %1132 = vst.msk [vmem:[#allocation3] sm:$0x3] %vm1131, %v1126
    // Predicated region
    $region30: #{tpu_custom_call.1} parent=1 // pred_check
      _
    $region31: #{tpu_custom_call.1} parent=1 // pred_check_branch
      %1134 = sbr.rel (0) target = $region33
    $region32: #{tpu_custom_call.1} parent=1 // pred_region
      %1136 = vsyncadd [#allocation4], 0
      %s1138 = sshll.u32 [#allocation3], 4
      %s1139 = int_to_ptr.vmem [resolvable:$true] %s1138
      %s1140 = sshll.u32 %s7, 4
      %s1141 = int_to_ptr.hbm [resolvable:$true] %s1140
      %1143 = dma.vmem_to_hbm [thread:$0]  %s1139, 32, %s1141, [#allocation4]
    $region33: #{tpu_custom_call.1} parent=1 // pred_fallthru
      _
    // Predicated region
    $region34: #{tpu_custom_call.1} parent=1 // pred_check
      _
    $region35: #{tpu_custom_call.1} parent=1 // pred_check_branch
      %1145 = sbr.rel (0) target = $region37
    $region36: #{tpu_custom_call.1} parent=1 // pred_region
      %1147 = dma.done [#allocation4], 32
    $region37: #{tpu_custom_call.1} parent=1 // pred_fallthru
      _
    %1148 = vsyncpa [#allocation4], 1

</llo_original>
